<compile_context>
chip_gen: v7x
topology: tpu7x:2x2x1
jax: 0.10.0
libtpu: 0.0.40
codegen_flags: <defaults>
</compile_context>

<pallas_src>
import jax
import jax.numpy as jnp
from jax.experimental import pallas as pl
from jax.experimental.pallas import tpu as pltpu


def _cdiv(a, b):
    return -(-a // b)


def _round_up(a, b):
    return _cdiv(a, b) * b


# --------------------------------------------------------------------------
# Kernels
# --------------------------------------------------------------------------
def _pv_kernel_single(m_ref, x_ref, o_ref):
    # m_ref: (K, Opad)  folded weight (grid-invariant)
    # x_ref: (bb, K)    one batch block of flattened SPD matrices
    # o_ref: (bb, Opad) lane-dense output tile -> single store
    o_ref[...] = jnp.dot(
        x_ref[...], m_ref[...], preferred_element_type=jnp.float32
    ).astype(o_ref.dtype)


def _pv_kernel_ktiled(m_ref, x_ref, o_ref, acc_ref):
    # Contraction axis K tiled; accumulate in f32 scratch, store on last step.
    k = pl.program_id(1)

    @pl.when(k == 0)
    def _():
        acc_ref[...] = jnp.zeros_like(acc_ref)

    acc_ref[...] += jnp.dot(
        x_ref[...], m_ref[...], preferred_element_type=jnp.float32
    )

    @pl.when(k == pl.num_programs(1) - 1)
    def _():
        o_ref[...] = acc_ref[...].astype(o_ref.dtype)


# --------------------------------------------------------------------------
# Planning
# --------------------------------------------------------------------------
def _vmem_budgets():
    """Per-generation X-tile budget and scoped-VMEM cap."""
    try:
        cap = pltpu.get_tpu_info().vmem_capacity_bytes
    except Exception:
        cap = 64 << 20
    if cap >= (96 << 20):            # v5e / v6e: 128 MiB physical VMEM
        return 40 << 20, 96 << 20
    return 12 << 20, 32 << 20        # v7x: 64 MiB physical VMEM


def _plan(B, K, o_pad, itemsize):
    """Pick (bb, kt, nk, vmem_limit) so the full working set fits VMEM."""
    sub = max(8, 32 // itemsize)     # sublane packing: 8 f32, 16 bf16, 32 int8
    x_budget, limit_cap = _vmem_budgets()

    def working_set(bb, kt, nk):
        w_buf = 1 if nk == 1 else 2              # invariant weight -> 1 buffer
        return (2 * bb * kt * itemsize           # X, double-buffered
                + w_buf * kt * o_pad * itemsize  # folded weight, lane-padded
                + 2 * bb * o_pad * itemsize      # output tile, double-buffered
                + bb * o_pad * 4)                # f32 accumulator scratch

    # Contraction tiling: keep full K resident if a minimal batch block fits;
    # otherwise tile K in 128-multiples that divide K.
    kt, nk = K, 1
    if working_set(sub, K, 1) > limit_cap:
        if K % 128 == 0:
            q = K // 128
            best = 1
            for d in range(1, q + 1):
                if q % d == 0 and working_set(sub, 128 * d, K // (128 * d)) <= x_budget:
                    best = d
            kt, nk = 128 * best, K // (128 * best)
        # TODO(synk): if K=N*N is this large and not a multiple of 128, fall
        # through with kt=K; may exceed the scoped-VMEM cap for extreme N.

    # Batch block: biggest sublane-aligned block within the X budget.
    bb = max(sub, (x_budget // max(1, 2 * kt * itemsize)) // sub * sub)
    while bb > sub and working_set(bb, kt, nk) > limit_cap:
        bb = max(sub, ((bb // 2) // sub) * sub)
    if bb >= B:
        bb = B                                   # full-dim block is always legal
        # Keep >= 2 batch grid steps when possible: v7x has 2 TensorCores and a
        # 1-step "parallel" grid leaves one idle on this HBM-read-bound kernel.
        # Harmless on single-TC v5e/v6e.
        half = _round_up(_cdiv(B, 2), sub)
        if half < B:
            bb = half

    ws = working_set(bb, kt, nk)
    vmem_limit = min(limit_cap, ws + (4 << 20))
    vmem_limit = max(vmem_limit, ws + (2 << 20), 16 << 20)
    return bb, kt, nk, int(vmem_limit)


# --------------------------------------------------------------------------
# Wrapper
# --------------------------------------------------------------------------
def fold_weight(weight, out_dtype=jnp.float32):
    """Fold mean(W @ X @ W^T, axis=2) into one (N*N, O_pad) matmul RHS.

    M[i*N + j, o] = W[o, i] * mean_p W[p, j]; the output axis is zero-padded to
    a multiple of 128 (lane-dense).  Compute once per weight and pass to
    `parametric_vectorize(..., folded=...)` to avoid rebuilding every call.
    """
    O, N = weight.shape
    o_pad = _round_up(O, 128)
    w32 = weight.astype(jnp.float32)
    v = jnp.mean(w32, axis=0)                                   # (N,)
    m = (w32[:, :, None] * v[None, None, :]).reshape(O, N * N)  # (O, K)
    if o_pad != O:
        m = jnp.concatenate(
            [m, jnp.zeros((o_pad - O, N * N), jnp.float32)], axis=0)
    return m.T.astype(out_dtype)                                # (K, o_pad)


def parametric_vectorize(x, weight, folded=None, *, min_pallas_bytes=2 << 20):
    """x: (B, N, N), weight: (O, N) -> (B, O). Matches mean(W @ X @ W^T, axis=2)."""
    B, N, N2 = x.shape
    assert N == N2, "input must be (B, N, N)"
    O, Nw = weight.shape
    assert Nw == N, "weight must be (O, N)"
    K = N * N
    o_pad = _round_up(O, 128)
    itemsize = jnp.dtype(x.dtype).itemsize

    if folded is None:
        folded = fold_weight(weight, out_dtype=x.dtype)         # (K, o_pad)
    x_flat = x.reshape(B, K)                                    # row-major merge

    # Tiny problems: pallas_call / DMA setup overhead dominates -> plain XLA.
    if B * K * itemsize < min_pallas_bytes:
        out = jnp.dot(x_flat, folded, preferred_element_type=jnp.float32)
        return out[:, :O].astype(x.dtype)

    bb, kt, nk, vmem_limit = _plan(B, K, o_pad, itemsize)
    nb = _cdiv(B, bb)

    cost = pl.CostEstimate(
        flops=2 * B * K * o_pad,
        transcendentals=0,
        bytes_accessed=B * K * itemsize + K * o_pad * itemsize + B * o_pad * itemsize,
    )

    if nk == 1:
        x_spec = pl.BlockSpec((bb, K), lambda b: (b, 0))
        out_spec = pl.BlockSpec((bb, o_pad), lambda b: (b, 0))

        def call(weight_spec):
            return pl.pallas_call(
                _pv_kernel_single,
                out_shape=jax.ShapeDtypeStruct((B, o_pad), x.dtype),
                grid=(nb,),
                in_specs=[weight_spec, x_spec],
                out_specs=out_spec,
                compiler_params=pltpu.CompilerParams(
                    dimension_semantics=("parallel",),
                    vmem_limit_bytes=vmem_limit,
                ),
                cost_estimate=cost,
            )(folded, x_flat)

        try:
            # Grid-invariant folded weight: hold a single VMEM copy.
            out = call(pl.BlockSpec((K, o_pad), lambda b: (0, 0),
                                    pipeline_mode=pl.Buffered(1)))
        except Exception:
            # Stricter builds: default (double-buffered) spec; the VMEM plan
            # still leaves headroom for the extra copy.
            out = call(pl.BlockSpec((K, o_pad), lambda b: (0, 0)))
    else:
        out = pl.pallas_call(
            _pv_kernel_ktiled,
            out_shape=jax.ShapeDtypeStruct((B, o_pad), x.dtype),
            grid=(nb, nk),
            in_specs=[
                pl.BlockSpec((kt, o_pad), lambda b, k: (k, 0)),
                pl.BlockSpec((bb, kt), lambda b, k: (b, k)),
            ],
            out_specs=pl.BlockSpec((bb, o_pad), lambda b, k: (b, 0)),
            scratch_shapes=[pltpu.VMEM((bb, o_pad), jnp.float32)],
            compiler_params=pltpu.CompilerParams(
                dimension_semantics=("parallel", "arbitrary"),
                vmem_limit_bytes=vmem_limit,
            ),
            cost_estimate=cost,
        )(folded, x_flat)

    return out[:, :O] if o_pad != O else out


# --------------------------------------------------------------------------
# Reference + test
# --------------------------------------------------------------------------
def _reference(x, weight):
    # Direct transcription of the PyTorch forward: bmm, bmm with W^T, mean(2).
    wx = jnp.einsum("oi,bij->boj", weight, x)
    y = jnp.einsum("boj,pj->bop", wx, weight)
    return jnp.mean(y, axis=2)


if __name__ == "__main__":
    B, input_size, output_size = 2, 16, 8

    key = jax.random.PRNGKey(0)
    kx, kw, kx2 = jax.random.split(key, 3)
    x = jax.random.normal(kx, (B, input_size, input_size), dtype=jnp.float32)

    # Matches nn.Parameter(torch.ones(output_size, input_size)).
    weight_ones = jnp.ones((output_size, input_size), dtype=jnp.float32)
    out = jax.block_until_ready(
        parametric_vectorize(x, weight_ones, min_pallas_bytes=0)  # force Pallas path
    )
    ref = _reference(x, weight_ones)
    assert out.shape == (B, output_size)
    assert jnp.allclose(out, ref, atol=1e-4, rtol=1e-4), (out, ref)

    # Non-trivial (trained-like) weight validates the algebraic fold; also
    # check the tiny-shape XLA fallback path (default threshold).
    weight_rand = jax.random.normal(kw, (output_size, input_size), dtype=jnp.float32)
    out2 = jax.block_until_ready(parametric_vectorize(x, weight_rand, min_pallas_bytes=0))
    out2_fb = jax.block_until_ready(parametric_vectorize(x, weight_rand))
    ref2 = _reference(x, weight_rand)
    assert jnp.allclose(out2, ref2, atol=1e-4, rtol=1e-4), (out2, ref2)
    assert jnp.allclose(out2_fb, ref2, atol=1e-4, rtol=1e-4), (out2_fb, ref2)

    # Larger batch exercises the multi-step ("parallel") batch grid.
    xb = jax.random.normal(kx2, (32, input_size, input_size), dtype=jnp.float32)
    out3 = jax.block_until_ready(parametric_vectorize(xb, weight_rand, min_pallas_bytes=0))
    ref3 = _reference(xb, weight_rand)
    assert jnp.allclose(out3, ref3, atol=1e-4, rtol=1e-4), (out3, ref3)

    print("KERNEL_OK")
</pallas_src>

<mosaic_0001>
module attributes {stable_mosaic.version = 11 : i64} {
  func.func @_pv_kernel_single(%arg0: i32, %arg1: memref<256x128xf32, #tpu.memory_space<vmem>>, %arg2: memref<2x256xf32, #tpu.memory_space<vmem>>, %arg3: memref<2x128xf32, #tpu.memory_space<vmem>>) attributes {dimension_semantics = [#tpu.dimension_semantics<parallel>], iteration_bounds = array<i64: 1>, scalar_prefetch = 0 : i64, scratch_operands = 0 : i64, tpu.core_type = #tpu.core_type<tc>, window_params = [{pipeline_mode = #tpu.pipeline_mode<synchronous>, transform_indices = @transform_0, window_bounds = array<i64: 256, 128>}, {transform_indices = @transform_1, window_bounds = array<i64: 2, 256>}, {transform_indices = @transform_2, window_bounds = array<i64: 2, 128>}]} {
    %c0 = arith.constant 0 : index
    %c0_0 = arith.constant 0 : index
    %0 = vector.load %arg2[%c0, %c0_0] : memref<2x256xf32, #tpu.memory_space<vmem>>, vector<2x256xf32>
    %c0_1 = arith.constant 0 : index
    %c0_2 = arith.constant 0 : index
    %1 = vector.load %arg1[%c0_1, %c0_2] : memref<256x128xf32, #tpu.memory_space<vmem>>, vector<256x128xf32>
    %cst = arith.constant dense<0.000000e+00> : vector<2x128xf32>
    %2 = tpu.matmul %0, %1, %cst {dimension_numbers = #tpu.dot_dimension_numbers<[1], [0], [0], [1], [0, 0, 1, 1], [], []>} : vector<2x256xf32>, vector<256x128xf32>, vector<2x128xf32> -> vector<2x128xf32>
    %c0_3 = arith.constant 0 : index
    %c0_4 = arith.constant 0 : index
    %3 = vector.load %arg3[%c0_3, %c0_4] : memref<2x128xf32, #tpu.memory_space<vmem>>, vector<2x128xf32>
    tpu.vector_store %arg3[%c0_3, %c0_4], %2 {strides = array<i32>} : memref<2x128xf32, #tpu.memory_space<vmem>>, vector<2x128xf32>,
    return
  }
  func.func @transform_0(%arg0: i32) -> (i32, i32) {
    %c0_i32 = arith.constant 0 : i32
    %c0_i32_0 = arith.constant 0 : i32
    %c0_i32_1 = arith.constant 0 : i32
    return %c0_i32, %c0_i32_0 : i32, i32
  }
  func.func @transform_1(%arg0: i32) -> (i32, i32) {
    %c0_i32 = arith.constant 0 : i32
    %c0_i32_0 = arith.constant 0 : i32
    return %arg0, %c0_i32 : i32, i32
  }
  func.func @transform_2(%arg0: i32) -> (i32, i32) {
    %c0_i32 = arith.constant 0 : i32
    %c0_i32_0 = arith.constant 0 : i32
    return %arg0, %c0_i32 : i32, i32
  }
}

module attributes {stable_mosaic.version = 11 : i64} {
  func.func @_pv_kernel_single(%arg0: i32, %arg1: memref<256x128xf32, #tpu.memory_space<vmem>>, %arg2: memref<2x256xf32, #tpu.memory_space<vmem>>, %arg3: memref<2x128xf32, #tpu.memory_space<vmem>>) attributes {dimension_semantics = [#tpu.dimension_semantics<parallel>], iteration_bounds = array<i64: 1>, scalar_prefetch = 0 : i64, scratch_operands = 0 : i64, tpu.core_type = #tpu.core_type<tc>, window_params = [{pipeline_mode = #tpu.pipeline_mode<synchronous>, transform_indices = @transform_0, window_bounds = array<i64: 256, 128>}, {transform_indices = @transform_1, window_bounds = array<i64: 2, 256>}, {transform_indices = @transform_2, window_bounds = array<i64: 2, 128>}]} {
    %c0 = arith.constant 0 : index
    %c0_0 = arith.constant 0 : index
    %0 = vector.load %arg2[%c0, %c0_0] : memref<2x256xf32, #tpu.memory_space<vmem>>, vector<2x256xf32>
    %c0_1 = arith.constant 0 : index
    %c0_2 = arith.constant 0 : index
    %1 = vector.load %arg1[%c0_1, %c0_2] : memref<256x128xf32, #tpu.memory_space<vmem>>, vector<256x128xf32>
    %cst = arith.constant dense<0.000000e+00> : vector<2x128xf32>
    %2 = tpu.matmul %0, %1, %cst {dimension_numbers = #tpu.dot_dimension_numbers<[1], [0], [0], [1], [0, 0, 1, 1], [], []>} : vector<2x256xf32>, vector<256x128xf32>, vector<2x128xf32> -> vector<2x128xf32>
    %c0_3 = arith.constant 0 : index
    %c0_4 = arith.constant 0 : index
    %3 = vector.load %arg3[%c0_3, %c0_4] : memref<2x128xf32, #tpu.memory_space<vmem>>, vector<2x128xf32>
    tpu.vector_store %arg3[%c0_3, %c0_4], %2 {strides = array<i32>} : memref<2x128xf32, #tpu.memory_space<vmem>>, vector<2x128xf32>,
    return
  }
  func.func @transform_0(%arg0: i32) -> (i32, i32) {
    %c0_i32 = arith.constant 0 : i32
    %c0_i32_0 = arith.constant 0 : i32
    %c0_i32_1 = arith.constant 0 : i32
    return %c0_i32, %c0_i32_0 : i32, i32
  }
  func.func @transform_1(%arg0: i32) -> (i32, i32) {
    %c0_i32 = arith.constant 0 : i32
    %c0_i32_0 = arith.constant 0 : i32
    return %arg0, %c0_i32 : i32, i32
  }
  func.func @transform_2(%arg0: i32) -> (i32, i32) {
    %c0_i32 = arith.constant 0 : i32
    %c0_i32_0 = arith.constant 0 : i32
    return %arg0, %c0_i32 : i32, i32
  }
}

</mosaic_0001>

<llo_original>
// kernel: tpu_custom_call.1
$region0: #{tpu_custom_call.1}
  #allocation0 [shape = 'u32[]', space=smem, size = 0x4, offset = 0x4, fixed_abs, tag = 'smem constant byte address 0x4 - core index']
  #allocation1 [shape = 'u32[144,128]{1,0:T(1,128)}', space=vmem, size = 0x12000, scoped, tag = 'internal scratch']
  %s0 = inlined_call_operand.hbm [shape: f32[256,128], index: 0, kind: input, shape index: {}]
  %s1 = inlined_call_operand.hbm [shape: f32[2,256], index: 1, kind: input, shape index: {}]
  %s2 = inlined_call_operand.hbm [shape: f32[2,128], index: 2, kind: output, shape index: {}]
  %s3 = sld [smem:[#allocation0]]
  $region26: #{tpu_custom_call.1} parent=0
    _
  %s5 = ssub.s32 1, %s3
  %s6 = scalar_select 0, %s5, %s3
  $region1: #{tpu_custom_call.1} parent=0
    #allocation2 [shape = 'u8[131072]{0}', space=vmem, size = 0x20000, scoped, tag = 'input window, operand 0, single buffered']
    #allocation3 [shape = 's32[1]{0}', space=sflag, size = 0x4, scoped, tag = 'scoped memory for tpu_custom_call.1']
    #allocation4 [shape = 's32[1]{0}', space=sflag, size = 0x4, scoped, tag = 'scoped memory for tpu_custom_call.1']
    #allocation5 [shape = 'u8[2048]{0}', space=vmem, size = 0x800, scoped, tag = 'input window, operand 1, single buffered']
    #allocation6 [shape = 's32[1]{0}', space=sflag, size = 0x4, scoped, tag = 'scoped memory for tpu_custom_call.1']
    #allocation7 [shape = 'u8[1024]{0}', space=vmem, size = 0x400, scoped, tag = 'output window, operand 0, single buffered']
    %7 = vsyncpa [#allocation3], 0
    %8 = vsyncpa [#allocation6], 0
    %9 = vsyncpa [#allocation4], 0
    // Predicated region
    $region2: #{tpu_custom_call.1} parent=1 // pred_check
      _
    $region3: #{tpu_custom_call.1} parent=1 // pred_check_branch
      %11 = sbr.rel (0) target = $region5
    $region4: #{tpu_custom_call.1} parent=1 // pred_region
      %s13 = ssub.s32 4096, 4096
      %14 = vsyncadd [#allocation3], %s13
      %s15 = sshll.u32 [#allocation2], 4
      %s16 = int_to_ptr.vmem [resolvable:$true] %s15
      %21 = dma.hbm_to_vmem [thread:$0]  %s0, 4096, %s16, [#allocation3], 128, 128, 8
    $region5: #{tpu_custom_call.1} parent=1 // pred_fallthru
      _
    // Predicated region
    $region6: #{tpu_custom_call.1} parent=1 // pred_check
      _
    $region7: #{tpu_custom_call.1} parent=1 // pred_check_branch
      %23 = sbr.rel (0) target = $region9
    $region8: #{tpu_custom_call.1} parent=1 // pred_region
      %s25 = ssub.s32 64, 64
      %26 = vsyncadd [#allocation6], %s25
      %s28 = sshll.u32 [#allocation5], 4
      %s29 = int_to_ptr.vmem [resolvable:$true] %s28
      %31 = dma.hbm_to_vmem [thread:$0]  %s1, 64, %s29, [#allocation6]
    $region9: #{tpu_custom_call.1} parent=1 // pred_fallthru
      _
    // Predicated region
    $region10: #{tpu_custom_call.1} parent=1 // pred_check
      _
    $region11: #{tpu_custom_call.1} parent=1 // pred_check_branch
      %33 = sbr.rel (0) target = $region13
    $region12: #{tpu_custom_call.1} parent=1 // pred_region
      %34 = dma.done [#allocation3], 4096
    $region13: #{tpu_custom_call.1} parent=1 // pred_fallthru
      _
    // Predicated region
    $region14: #{tpu_custom_call.1} parent=1 // pred_check
      _
    $region15: #{tpu_custom_call.1} parent=1 // pred_check_branch
      %36 = sbr.rel (0) target = $region17
    $region16: #{tpu_custom_call.1} parent=1 // pred_region
      %37 = dma.done [#allocation6], 64
    $region17: #{tpu_custom_call.1} parent=1 // pred_fallthru
      _
    %v38 = vld [vmem:[#allocation5] sm:$0xf]
    %v39 = vld [vmem:[#allocation2] sm:$0xff]
    %v40 = vld [vmem:[#allocation2 + $0x8] sm:$0xff]
    %v41 = vld [vmem:[#allocation2 + $0x10] sm:$0xff]
    %v42 = vld [vmem:[#allocation2 + $0x18] sm:$0xff]
    %v43 = vld [vmem:[#allocation2 + $0x20] sm:$0xff]
    %v44 = vld [vmem:[#allocation2 + $0x28] sm:$0xff]
    %v45 = vld [vmem:[#allocation2 + $0x30] sm:$0xff]
    %v46 = vld [vmem:[#allocation2 + $0x38] sm:$0xff]
    %v47 = vld [vmem:[#allocation2 + $0x40] sm:$0xff]
    %v48 = vld [vmem:[#allocation2 + $0x48] sm:$0xff]
    %v49 = vld [vmem:[#allocation2 + $0x50] sm:$0xff]
    %v50 = vld [vmem:[#allocation2 + $0x58] sm:$0xff]
    %v51 = vld [vmem:[#allocation2 + $0x60] sm:$0xff]
    %v52 = vld [vmem:[#allocation2 + $0x68] sm:$0xff]
    %v53 = vld [vmem:[#allocation2 + $0x70] sm:$0xff]
    %v54 = vld [vmem:[#allocation2 + $0x78] sm:$0xff]
    %v55 = vld [vmem:[#allocation2 + $0x80] sm:$0xff]
    %v56 = vld [vmem:[#allocation2 + $0x88] sm:$0xff]
    %v57 = vld [vmem:[#allocation2 + $0x90] sm:$0xff]
    %v58 = vld [vmem:[#allocation2 + $0x98] sm:$0xff]
    %v59 = vld [vmem:[#allocation2 + $0xa0] sm:$0xff]
    %v60 = vld [vmem:[#allocation2 + $0xa8] sm:$0xff]
    %v61 = vld [vmem:[#allocation2 + $0xb0] sm:$0xff]
    %v62 = vld [vmem:[#allocation2 + $0xb8] sm:$0xff]
    %v63 = vld [vmem:[#allocation2 + $0xc0] sm:$0xff]
    %v64 = vld [vmem:[#allocation2 + $0xc8] sm:$0xff]
    %v65 = vld [vmem:[#allocation2 + $0xd0] sm:$0xff]
    %v66 = vld [vmem:[#allocation2 + $0xd8] sm:$0xff]
    %v67 = vld [vmem:[#allocation2 + $0xe0] sm:$0xff]
    %v68 = vld [vmem:[#allocation2 + $0xe8] sm:$0xff]
    %v69 = vld [vmem:[#allocation2 + $0xf0] sm:$0xff]
    %v70 = vld [vmem:[#allocation2 + $0xf8] sm:$0xff]
    %v73 = vunpack.c.l.s4 1983009808
    %v74 = vunpack.c.0.s8 %v73
    %v75 = vlaneseq
    %v76 = vshrl.u32 %v75, 7
    %v77 = vsub.s32 %v74, %v76
    %v78 = vrot.slane %v38, %v77
    %v79 = vcombine.high %v78, %v78
    %82 = vmatprep.subr.mxu0 0.0
    %83 = vmatpush1.msra.mxu0 %v39
    %84 = vmatprep.subr.mxu0 0.0
    %85 = vmatpush1.msra.mxu0 %v40
    %86 = vmatprep.subr.mxu0 0.0
    %87 = vmatpush1.msra.mxu0 %v41
    %88 = vmatprep.subr.mxu0 0.0
    %89 = vmatpush1.msra.mxu0 %v42
    %90 = vmatprep.subr.mxu0 0.0
    %91 = vmatpush1.msra.mxu0 %v43
    %92 = vmatprep.subr.mxu0 0.0
    %93 = vmatpush1.msra.mxu0 %v44
    %94 = vmatprep.subr.mxu0 0.0
    %95 = vmatpush1.msra.mxu0 %v45
    %96 = vmatprep.subr.mxu0 0.0
    %97 = vmatpush1.msra.mxu0 %v46
    %98 = vmatprep.subr.mxu0 0.0
    %99 = vmatpush1.msra.mxu0 %v47
    %100 = vmatprep.subr.mxu0 0.0
    %101 = vmatpush1.msra.mxu0 %v48
    %102 = vmatprep.subr.mxu0 0.0
    %103 = vmatpush1.msra.mxu0 %v49
    %104 = vmatprep.subr.mxu0 0.0
    %105 = vmatpush1.msra.mxu0 %v50
    %106 = vmatprep.subr.mxu0 0.0
    %107 = vmatpush1.msra.mxu0 %v51
    %108 = vmatprep.subr.mxu0 0.0
    %109 = vmatpush1.msra.mxu0 %v52
    %110 = vmatprep.subr.mxu0 0.0
    %111 = vmatpush1.msra.mxu0 %v53
    %112 = vmatprep.subr.mxu0 0.0
    %113 = vmatpush1.msra.mxu0 %v54
    %114 = vmatprep.subr.mxu0 0.0
    %115 = vmatpush1.msra.mxu0 %v55
    %116 = vmatprep.subr.mxu0 0.0
    %117 = vmatpush1.msra.mxu0 %v56
    %118 = vmatprep.subr.mxu0 0.0
    %119 = vmatpush1.msra.mxu0 %v57
    %120 = vmatprep.subr.mxu0 0.0
    %121 = vmatpush1.msra.mxu0 %v58
    %122 = vmatprep.subr.mxu0 0.0
    %123 = vmatpush1.msra.mxu0 %v59
    %124 = vmatprep.subr.mxu0 0.0
    %125 = vmatpush1.msra.mxu0 %v60
    %126 = vmatprep.subr.mxu0 0.0
    %127 = vmatpush1.msra.mxu0 %v61
    %128 = vmatprep.subr.mxu0 0.0
    %129 = vmatpush1.msra.mxu0 %v62
    %130 = vmatprep.subr.mxu0 0.0
    %131 = vmatpush1.msra.mxu0 %v63
    %132 = vmatprep.subr.mxu0 0.0
    %133 = vmatpush1.msra.mxu0 %v64
    %134 = vmatprep.subr.mxu0 0.0
    %135 = vmatpush1.msra.mxu0 %v65
    %136 = vmatprep.subr.mxu0 0.0
    %137 = vmatpush1.msra.mxu0 %v66
    %138 = vmatprep.subr.mxu0 0.0
    %139 = vmatpush1.msra.mxu0 %v67
    %140 = vmatprep.subr.mxu0 0.0
    %141 = vmatpush1.msra.mxu0 %v68
    %142 = vmatprep.subr.mxu0 0.0
    %143 = vmatpush1.msra.mxu0 %v69
    %144 = vmatprep.subr.mxu0 0.0
    %145 = vmatpush1.msra.mxu0 %v70
    %146 = vmatprep.mubr.f32.mxu0 %v79
    %147 = vmatmul.mubr.f32.gmra.mrb[0].mxu0 %v78
    %v148 = vpop.f32.mrb[0].mxu0
    %v149 = vadd.f32 0.0, %v148
    %v150 = vpop.f32.mrb[0].mxu0
    %151 = vdwg.mxu0
    %152 = vst [vmem:[#allocation7] sm:$0x3] %v149
    // Predicated region
    $region18: #{tpu_custom_call.1} parent=1 // pred_check
      _
    $region19: #{tpu_custom_call.1} parent=1 // pred_check_branch
      %154 = sbr.rel (0) target = $region21
    $region20: #{tpu_custom_call.1} parent=1 // pred_region
      %s156 = ssub.s32 32, 32
      %157 = vsyncadd [#allocation4], %s156
      %s159 = sshll.u32 [#allocation7], 4
      %s160 = int_to_ptr.vmem [resolvable:$true] %s159
      %162 = dma.vmem_to_hbm [thread:$0]  %s160, 32, %s2, [#allocation4]
    $region21: #{tpu_custom_call.1} parent=1 // pred_fallthru
      _
    // Predicated region
    $region22: #{tpu_custom_call.1} parent=1 // pred_check
      _
    $region23: #{tpu_custom_call.1} parent=1 // pred_check_branch
      %164 = sbr.rel (0) target = $region25
    $region24: #{tpu_custom_call.1} parent=1 // pred_region
      %165 = dma.done [#allocation4], 32
    $region25: #{tpu_custom_call.1} parent=1 // pred_fallthru
      _
    %166 = vsyncpa [#allocation3], 1
    %167 = vsyncpa [#allocation6], 1
    %168 = vsyncpa [#allocation4], 1

// kernel: tpu_custom_call.1
$region0: #{tpu_custom_call.1}
  #allocation0 [shape = 'u32[]', space=smem, size = 0x4, offset = 0x4, fixed_abs, tag = 'smem constant byte address 0x4 - core index']
  #allocation1 [shape = 'u32[144,128]{1,0:T(1,128)}', space=vmem, size = 0x12000, scoped, tag = 'internal scratch']
  %s0 = inlined_call_operand.hbm [shape: f32[256,128], index: 0, kind: input, shape index: {}]
  %s1 = inlined_call_operand.hbm [shape: f32[2,256], index: 1, kind: input, shape index: {}]
  %s2 = inlined_call_operand.hbm [shape: f32[2,128], index: 2, kind: output, shape index: {}]
  %s3 = sld [smem:[#allocation0]]
  $region26: #{tpu_custom_call.1} parent=0
    _
  %s5 = ssub.s32 1, %s3
  %s6 = scalar_select 0, %s5, %s3
  $region1: #{tpu_custom_call.1} parent=0
    #allocation2 [shape = 'u8[131072]{0}', space=vmem, size = 0x20000, scoped, tag = 'input window, operand 0, single buffered']
    #allocation3 [shape = 's32[1]{0}', space=sflag, size = 0x4, scoped, tag = 'scoped memory for tpu_custom_call.1']
    #allocation4 [shape = 's32[1]{0}', space=sflag, size = 0x4, scoped, tag = 'scoped memory for tpu_custom_call.1']
    #allocation5 [shape = 'u8[2048]{0}', space=vmem, size = 0x800, scoped, tag = 'input window, operand 1, single buffered']
    #allocation6 [shape = 's32[1]{0}', space=sflag, size = 0x4, scoped, tag = 'scoped memory for tpu_custom_call.1']
    #allocation7 [shape = 'u8[1024]{0}', space=vmem, size = 0x400, scoped, tag = 'output window, operand 0, single buffered']
    %7 = vsyncpa [#allocation3], 0
    %8 = vsyncpa [#allocation6], 0
    %9 = vsyncpa [#allocation4], 0
    // Predicated region
    $region2: #{tpu_custom_call.1} parent=1 // pred_check
      _
    $region3: #{tpu_custom_call.1} parent=1 // pred_check_branch
      %11 = sbr.rel (0) target = $region5
    $region4: #{tpu_custom_call.1} parent=1 // pred_region
      %s13 = ssub.s32 4096, 4096
      %14 = vsyncadd [#allocation3], %s13
      %s15 = sshll.u32 [#allocation2], 4
      %s16 = int_to_ptr.vmem [resolvable:$true] %s15
      %21 = dma.hbm_to_vmem [thread:$0]  %s0, 4096, %s16, [#allocation3], 128, 128, 8
    $region5: #{tpu_custom_call.1} parent=1 // pred_fallthru
      _
    // Predicated region
    $region6: #{tpu_custom_call.1} parent=1 // pred_check
      _
    $region7: #{tpu_custom_call.1} parent=1 // pred_check_branch
      %23 = sbr.rel (0) target = $region9
    $region8: #{tpu_custom_call.1} parent=1 // pred_region
      %s25 = ssub.s32 64, 64
      %26 = vsyncadd [#allocation6], %s25
      %s28 = sshll.u32 [#allocation5], 4
      %s29 = int_to_ptr.vmem [resolvable:$true] %s28
      %31 = dma.hbm_to_vmem [thread:$0]  %s1, 64, %s29, [#allocation6]
    $region9: #{tpu_custom_call.1} parent=1 // pred_fallthru
      _
    // Predicated region
    $region10: #{tpu_custom_call.1} parent=1 // pred_check
      _
    $region11: #{tpu_custom_call.1} parent=1 // pred_check_branch
      %33 = sbr.rel (0) target = $region13
    $region12: #{tpu_custom_call.1} parent=1 // pred_region
      %34 = dma.done [#allocation3], 4096
    $region13: #{tpu_custom_call.1} parent=1 // pred_fallthru
      _
    // Predicated region
    $region14: #{tpu_custom_call.1} parent=1 // pred_check
      _
    $region15: #{tpu_custom_call.1} parent=1 // pred_check_branch
      %36 = sbr.rel (0) target = $region17
    $region16: #{tpu_custom_call.1} parent=1 // pred_region
      %37 = dma.done [#allocation6], 64
    $region17: #{tpu_custom_call.1} parent=1 // pred_fallthru
      _
    %v38 = vld [vmem:[#allocation5] sm:$0xf]
    %v39 = vld [vmem:[#allocation2] sm:$0xff]
    %v40 = vld [vmem:[#allocation2 + $0x8] sm:$0xff]
    %v41 = vld [vmem:[#allocation2 + $0x10] sm:$0xff]
    %v42 = vld [vmem:[#allocation2 + $0x18] sm:$0xff]
    %v43 = vld [vmem:[#allocation2 + $0x20] sm:$0xff]
    %v44 = vld [vmem:[#allocation2 + $0x28] sm:$0xff]
    %v45 = vld [vmem:[#allocation2 + $0x30] sm:$0xff]
    %v46 = vld [vmem:[#allocation2 + $0x38] sm:$0xff]
    %v47 = vld [vmem:[#allocation2 + $0x40] sm:$0xff]
    %v48 = vld [vmem:[#allocation2 + $0x48] sm:$0xff]
    %v49 = vld [vmem:[#allocation2 + $0x50] sm:$0xff]
    %v50 = vld [vmem:[#allocation2 + $0x58] sm:$0xff]
    %v51 = vld [vmem:[#allocation2 + $0x60] sm:$0xff]
    %v52 = vld [vmem:[#allocation2 + $0x68] sm:$0xff]
    %v53 = vld [vmem:[#allocation2 + $0x70] sm:$0xff]
    %v54 = vld [vmem:[#allocation2 + $0x78] sm:$0xff]
    %v55 = vld [vmem:[#allocation2 + $0x80] sm:$0xff]
    %v56 = vld [vmem:[#allocation2 + $0x88] sm:$0xff]
    %v57 = vld [vmem:[#allocation2 + $0x90] sm:$0xff]
    %v58 = vld [vmem:[#allocation2 + $0x98] sm:$0xff]
    %v59 = vld [vmem:[#allocation2 + $0xa0] sm:$0xff]
    %v60 = vld [vmem:[#allocation2 + $0xa8] sm:$0xff]
    %v61 = vld [vmem:[#allocation2 + $0xb0] sm:$0xff]
    %v62 = vld [vmem:[#allocation2 + $0xb8] sm:$0xff]
    %v63 = vld [vmem:[#allocation2 + $0xc0] sm:$0xff]
    %v64 = vld [vmem:[#allocation2 + $0xc8] sm:$0xff]
    %v65 = vld [vmem:[#allocation2 + $0xd0] sm:$0xff]
    %v66 = vld [vmem:[#allocation2 + $0xd8] sm:$0xff]
    %v67 = vld [vmem:[#allocation2 + $0xe0] sm:$0xff]
    %v68 = vld [vmem:[#allocation2 + $0xe8] sm:$0xff]
    %v69 = vld [vmem:[#allocation2 + $0xf0] sm:$0xff]
    %v70 = vld [vmem:[#allocation2 + $0xf8] sm:$0xff]
    %v73 = vunpack.c.l.s4 1983009808
    %v74 = vunpack.c.0.s8 %v73
    %v75 = vlaneseq
    %v76 = vshrl.u32 %v75, 7
    %v77 = vsub.s32 %v74, %v76
    %v78 = vrot.slane %v38, %v77
    %v79 = vcombine.high %v78, %v78
    %82 = vmatprep.subr.mxu0 0.0
    %83 = vmatpush1.msra.mxu0 %v39
    %84 = vmatprep.subr.mxu0 0.0
    %85 = vmatpush1.msra.mxu0 %v40
    %86 = vmatprep.subr.mxu0 0.0
    %87 = vmatpush1.msra.mxu0 %v41
    %88 = vmatprep.subr.mxu0 0.0
    %89 = vmatpush1.msra.mxu0 %v42
    %90 = vmatprep.subr.mxu0 0.0
    %91 = vmatpush1.msra.mxu0 %v43
    %92 = vmatprep.subr.mxu0 0.0
    %93 = vmatpush1.msra.mxu0 %v44
    %94 = vmatprep.subr.mxu0 0.0
    %95 = vmatpush1.msra.mxu0 %v45
    %96 = vmatprep.subr.mxu0 0.0
    %97 = vmatpush1.msra.mxu0 %v46
    %98 = vmatprep.subr.mxu0 0.0
    %99 = vmatpush1.msra.mxu0 %v47
    %100 = vmatprep.subr.mxu0 0.0
    %101 = vmatpush1.msra.mxu0 %v48
    %102 = vmatprep.subr.mxu0 0.0
    %103 = vmatpush1.msra.mxu0 %v49
    %104 = vmatprep.subr.mxu0 0.0
    %105 = vmatpush1.msra.mxu0 %v50
    %106 = vmatprep.subr.mxu0 0.0
    %107 = vmatpush1.msra.mxu0 %v51
    %108 = vmatprep.subr.mxu0 0.0
    %109 = vmatpush1.msra.mxu0 %v52
    %110 = vmatprep.subr.mxu0 0.0
    %111 = vmatpush1.msra.mxu0 %v53
    %112 = vmatprep.subr.mxu0 0.0
    %113 = vmatpush1.msra.mxu0 %v54
    %114 = vmatprep.subr.mxu0 0.0
    %115 = vmatpush1.msra.mxu0 %v55
    %116 = vmatprep.subr.mxu0 0.0
    %117 = vmatpush1.msra.mxu0 %v56
    %118 = vmatprep.subr.mxu0 0.0
    %119 = vmatpush1.msra.mxu0 %v57
    %120 = vmatprep.subr.mxu0 0.0
    %121 = vmatpush1.msra.mxu0 %v58
    %122 = vmatprep.subr.mxu0 0.0
    %123 = vmatpush1.msra.mxu0 %v59
    %124 = vmatprep.subr.mxu0 0.0
    %125 = vmatpush1.msra.mxu0 %v60
    %126 = vmatprep.subr.mxu0 0.0
    %127 = vmatpush1.msra.mxu0 %v61
    %128 = vmatprep.subr.mxu0 0.0
    %129 = vmatpush1.msra.mxu0 %v62
    %130 = vmatprep.subr.mxu0 0.0
    %131 = vmatpush1.msra.mxu0 %v63
    %132 = vmatprep.subr.mxu0 0.0
    %133 = vmatpush1.msra.mxu0 %v64
    %134 = vmatprep.subr.mxu0 0.0
    %135 = vmatpush1.msra.mxu0 %v65
    %136 = vmatprep.subr.mxu0 0.0
    %137 = vmatpush1.msra.mxu0 %v66
    %138 = vmatprep.subr.mxu0 0.0
    %139 = vmatpush1.msra.mxu0 %v67
    %140 = vmatprep.subr.mxu0 0.0
    %141 = vmatpush1.msra.mxu0 %v68
    %142 = vmatprep.subr.mxu0 0.0
    %143 = vmatpush1.msra.mxu0 %v69
    %144 = vmatprep.subr.mxu0 0.0
    %145 = vmatpush1.msra.mxu0 %v70
    %146 = vmatprep.mubr.f32.mxu0 %v79
    %147 = vmatmul.mubr.f32.gmra.mrb[0].mxu0 %v78
    %v148 = vpop.f32.mrb[0].mxu0
    %v149 = vadd.f32 0.0, %v148
    %v150 = vpop.f32.mrb[0].mxu0
    %151 = vdwg.mxu0
    %152 = vst [vmem:[#allocation7] sm:$0x3] %v149
    // Predicated region
    $region18: #{tpu_custom_call.1} parent=1 // pred_check
      _
    $region19: #{tpu_custom_call.1} parent=1 // pred_check_branch
      %154 = sbr.rel (0) target = $region21
    $region20: #{tpu_custom_call.1} parent=1 // pred_region
      %s156 = ssub.s32 32, 32
      %157 = vsyncadd [#allocation4], %s156
      %s159 = sshll.u32 [#allocation7], 4
      %s160 = int_to_ptr.vmem [resolvable:$true] %s159
      %162 = dma.vmem_to_hbm [thread:$0]  %s160, 32, %s2, [#allocation4]
    $region21: #{tpu_custom_call.1} parent=1 // pred_fallthru
      _
    // Predicated region
    $region22: #{tpu_custom_call.1} parent=1 // pred_check
      _
    $region23: #{tpu_custom_call.1} parent=1 // pred_check_branch
      %164 = sbr.rel (0) target = $region25
    $region24: #{tpu_custom_call.1} parent=1 // pred_region
      %165 = dma.done [#allocation4], 32
    $region25: #{tpu_custom_call.1} parent=1 // pred_fallthru
      _
    %166 = vsyncpa [#allocation3], 1
    %167 = vsyncpa [#allocation6], 1
    %168 = vsyncpa [#allocation4], 1

</llo_original>
